<compile_context>
chip_gen: v7x
topology: tpu7x:2x2x1
jax: 0.10.0
libtpu: 0.0.40
codegen_flags: <defaults>
</compile_context>

<pallas_src>
import functools

import jax
import jax.numpy as jnp
from jax import lax
from jax.experimental import pallas as pl
from jax.experimental.pallas import tpu as pltpu


def _lstm_recurrence_kernel(xw_ref, whh_ref, wfc_ref, bfc_ref, out_ref,
                            h_ref, c_ref, *, hidden_size, chunk, seq_len,
                            unroll, needs_mask):
    """One grid step == `chunk` LSTM timesteps for one batch block.

    xw_ref : (chunk, bB, 4H)  precomputed x @ W_ih^T + (b_ih + b_hh), gate
                              order permuted to (i, f, o, g)
    whh_ref: (H, 4H)          recurrent weights, pre-transposed & permuted
    wfc_ref: (H, 5I), bfc_ref: (1, 5I)   Linear head (used once at the end)
    h_ref / c_ref: (bB, H) VMEM scratch carrying state across time chunks.
    Grid = (batch_blocks, time_chunks); time is the inner ("arbitrary") axis.
    """
    j = pl.program_id(1)                     # time-chunk index
    H = hidden_size

    @pl.when(j == 0)
    def _init():
        h_ref[...] = jnp.zeros_like(h_ref)
        c_ref[...] = jnp.zeros_like(c_ref)

    whh = whh_ref[...]                       # hoisted, resident for the chunk
    t0 = j * chunk

    def step(t, carry):
        h, c = carry
        # Only this recurrent dot is on the serial per-step critical path.
        gates = xw_ref[t] + jnp.dot(h.astype(whh.dtype), whh,
                                    preferred_element_type=jnp.float32)
        # Gate-permuted layout (i, f, o, g): sigmoid over the first 3H
        # columns, tanh over the last H (5H transcendental cols/step vs 9H).
        sig = jax.nn.sigmoid(gates[:, :3 * H])
        g_g = jnp.tanh(gates[:, 3 * H:])
        i_g = sig[:, 0 * H:1 * H]
        f_g = sig[:, 1 * H:2 * H]
        o_g = sig[:, 2 * H:3 * H]
        c_new = f_g * c + i_g * g_g
        h_new = o_g * jnp.tanh(c_new)
        if needs_mask:                       # only compiled in if T was padded
            valid = (t0 + t) < seq_len
            h_new = jnp.where(valid, h_new, h)
            c_new = jnp.where(valid, c_new, c)
        return h_new, c_new

    h, c = lax.fori_loop(0, chunk, step, (h_ref[...], c_ref[...]),
                         unroll=unroll)
    h_ref[...] = h
    c_ref[...] = c

    @pl.when(j == pl.num_programs(1) - 1)
    def _finalize():
        # FC head applied exactly once, on the final hidden state.
        out_ref[...] = (jnp.dot(h, wfc_ref[...],
                                preferred_element_type=jnp.float32)
                        + bfc_ref[...])


def _round_up(n, m):
    return ((n + m - 1) // m) * m


def _largest_divisor_leq(n, cap, multiple_of=1):
    for d in range(min(n, cap), 0, -1):
        if n % d == 0 and d % multiple_of == 0:
            return d
    return multiple_of


def lstm_forecast_forward(x, params, *,
                          recurrent_mm_dtype=jnp.float32,
                          xw_chunk_budget_bytes=8 << 20,
                          vmem_cap_bytes=64 << 20):
    """x: (B, T, I) float32 (PyTorch batch_first). Returns (B, 5, I)."""
    B, T, I = x.shape
    H = params["w_hh"].shape[1]              # w_hh: (4H, H)
    G = 4 * H
    O = params["w_fc"].shape[0]              # 5 * I

    # --- Gate permutation: PyTorch order (i, f, g, o) -> (i, f, o, g), so the
    # kernel's sigmoid/tanh slabs are contiguous.
    perm = jnp.concatenate([jnp.arange(0, H), jnp.arange(H, 2 * H),
                            jnp.arange(3 * H, 4 * H), jnp.arange(2 * H, 3 * H)])
    w_ih = params["w_ih"][perm]
    w_hh = params["w_hh"][perm]
    bias = (params["b_ih"] + params["b_hh"])[perm]

    # --- Pad batch to fill vreg sublanes (>=8 rows for f32) / MXU rows.
    B_pad = max(_round_up(B, 8), 8)
    if B_pad != B:
        x = jnp.pad(x, ((0, B_pad - B), (0, 0), (0, 0)))

    # --- Batched input projection for all timesteps, emitted time-major.
    # (For production sizes on v6e/v7x: drop HIGHEST / cast x, w_ih to bf16.)
    xw = jnp.einsum("bti,gi->tbg", x, w_ih,
                    precision=lax.Precision.HIGHEST) + bias
    xw = xw.astype(jnp.float32)              # (T, B_pad, 4H)

    # --- Batch block (parallel grid axis; feeds v7x's 2nd TensorCore).
    bB = _largest_divisor_leq(B_pad, 128, multiple_of=8)
    num_b_blocks = B_pad // bB

    # --- Time-chunk from a VMEM byte budget (2 pipeline buffers of xw chunk),
    # then pad T up to a multiple of chunk (kernel masks the padded steps).
    bytes_per_step = 2 * bB * G * 4
    chunk = max(1, min(int(xw_chunk_budget_bytes // max(bytes_per_step, 1)),
                       256, max(T, 1)))
    T_pad = _round_up(T, chunk)
    if T_pad != T:
        xw = jnp.pad(xw, ((0, T_pad - T), (0, 0), (0, 0)))
    num_chunks = T_pad // chunk
    needs_mask = (T_pad != T)
    unroll = min(8, chunk)                   # bounded unroll: no vreg blowup

    whh_t = w_hh.T.astype(recurrent_mm_dtype)        # (H, 4H)
    wfc_t = params["w_fc"].T.astype(jnp.float32)     # (H, 5I)
    bfc = params["b_fc"].reshape(1, O).astype(jnp.float32)

    # --- VMEM estimate -> scoped limit (capped for v7x's 64 MiB VMEM).
    mm_bytes = jnp.dtype(recurrent_mm_dtype).itemsize
    est = (2 * chunk * bB * G * 4            # xw double buffer
           + 2 * H * G * mm_bytes            # whh
           + 2 * H * O * 4 + 2 * 8 * 128 * 4  # fc head (resident)
           + 2 * bB * O * 4                  # out
           + 2 * bB * H * 4)                 # h/c scratch
    vmem_limit = int(min(vmem_cap_bytes, max(2 * est, 16 << 20)))

    kernel = functools.partial(_lstm_recurrence_kernel, hidden_size=H,
                               chunk=chunk, seq_len=T, unroll=unroll,
                               needs_mask=needs_mask)

    out = pl.pallas_call(
        kernel,
        out_shape=jax.ShapeDtypeStruct((B_pad, O), jnp.float32),
        grid_spec=pltpu.PrefetchScalarGridSpec(
            num_scalar_prefetch=0,
            grid=(num_b_blocks, num_chunks),
            in_specs=[
                pl.BlockSpec((chunk, bB, G), lambda b, j: (j, b, 0)),  # xw
                pl.BlockSpec((H, G), lambda b, j: (0, 0)),             # W_hh^T
                pl.BlockSpec((H, O), lambda b, j: (0, 0)),             # W_fc^T
                pl.BlockSpec((1, O), lambda b, j: (0, 0)),             # b_fc
            ],
            out_specs=pl.BlockSpec((bB, O), lambda b, j: (b, 0)),      # resident per b
            scratch_shapes=[
                pltpu.VMEM((bB, H), jnp.float32),   # h state
                pltpu.VMEM((bB, H), jnp.float32),   # c state
            ],
        ),
        compiler_params=pltpu.CompilerParams(
            dimension_semantics=("parallel", "arbitrary"),
            vmem_limit_bytes=vmem_limit),
    )(xw, whh_t, wfc_t, bfc)

    # out.view(-1, 5, x.shape[2]) with batch_first x -> (B, 5, I)
    return out[:B].reshape(B, 5, I)


def init_params(key, input_size, hidden_size):
    """Deterministic init matching nn.LSTM / nn.Linear parameter shapes."""
    I, H = input_size, hidden_size
    ks = jax.random.split(key, 6)
    s = 1.0 / jnp.sqrt(H)
    u = lambda k, shape: jax.random.uniform(k, shape, jnp.float32, -s, s)
    return {
        "w_ih": u(ks[0], (4 * H, I)),
        "w_hh": u(ks[1], (4 * H, H)),
        "b_ih": u(ks[2], (4 * H,)),
        "b_hh": u(ks[3], (4 * H,)),
        "w_fc": u(ks[4], (5 * I, H)),
        "b_fc": u(ks[5], (5 * I,)),
    }


def ref_forward(x, p):
    """Pure-JAX reference of the LSTM + FC semantics (PyTorch gate order)."""
    Hh = p["w_hh"].shape[1]
    h = jnp.zeros((x.shape[0], Hh), jnp.float32)
    c = jnp.zeros((x.shape[0], Hh), jnp.float32)
    for t in range(x.shape[1]):
        g = x[:, t, :] @ p["w_ih"].T + p["b_ih"] + h @ p["w_hh"].T + p["b_hh"]
        i_g = jax.nn.sigmoid(g[:, 0 * Hh:1 * Hh])
        f_g = jax.nn.sigmoid(g[:, 1 * Hh:2 * Hh])
        g_g = jnp.tanh(g[:, 2 * Hh:3 * Hh])
        o_g = jax.nn.sigmoid(g[:, 3 * Hh:4 * Hh])
        c = f_g * c + i_g * g_g
        h = o_g * jnp.tanh(c)
    o = h @ p["w_fc"].T + p["b_fc"]
    return o.reshape(-1, 5, x.shape[2])


if __name__ == "__main__":
    B, T, I, H = 2, 8, 4, 32

    key = jax.random.PRNGKey(0)
    k_x, k_p = jax.random.split(key)
    x = jax.random.normal(k_x, (B, T, I), dtype=jnp.float32)
    params = init_params(k_p, I, H)

    out = jax.jit(lstm_forecast_forward)(x, params)
    out = jax.block_until_ready(out)
    assert out.shape == (B, 5, I), out.shape

    ref = ref_forward(x, params)
    assert jnp.allclose(out, ref, atol=1e-4, rtol=1e-4), (
        float(jnp.max(jnp.abs(out - ref))))

    print("KERNEL_OK")
</pallas_src>

<mosaic_0001>
module attributes {stable_mosaic.version = 11 : i64} {
  func.func @_lstm_recurrence_kernel(%arg0: i32, %arg1: i32, %arg2: memref<8x8x128xf32, #tpu.memory_space<vmem>>, %arg3: memref<32x128xf32, #tpu.memory_space<vmem>>, %arg4: memref<32x20xf32, #tpu.memory_space<vmem>>, %arg5: memref<1x20xf32, #tpu.memory_space<vmem>>, %arg6: memref<8x20xf32, #tpu.memory_space<vmem>>, %arg7: memref<8x32xf32, #tpu.memory_space<vmem>>, %arg8: memref<8x32xf32, #tpu.memory_space<vmem>>) attributes {dimension_semantics = [#tpu.dimension_semantics<parallel>, #tpu.dimension_semantics<arbitrary>], iteration_bounds = array<i64: 1, 1>, scalar_prefetch = 0 : i64, scratch_operands = 2 : i64, tpu.core_type = #tpu.core_type<tc>, window_params = [{transform_indices = @transform_0, window_bounds = array<i64: 8, 8, 128>}, {pipeline_mode = #tpu.pipeline_mode<synchronous>, transform_indices = @transform_1, window_bounds = array<i64: 32, 128>}, {pipeline_mode = #tpu.pipeline_mode<synchronous>, transform_indices = @transform_2, window_bounds = array<i64: 32, 20>}, {pipeline_mode = #tpu.pipeline_mode<synchronous>, transform_indices = @transform_3, window_bounds = array<i64: 1, 20>}, {transform_indices = @transform_4, window_bounds = array<i64: 8, 20>}]} {
    %c0_i32 = arith.constant 0 : i32
    %0 = arith.cmpi eq, %arg1, %c0_i32 : i32
    %1 = arith.extui %0 : i1 to i32
    %c0_i32_0 = arith.constant 0 : i32
    %2 = arith.cmpi ne, %1, %c0_i32_0 : i32
    scf.if %2 {
      %cst_44 = arith.constant 0.000000e+00 : f32
      %179 = vector.broadcast %cst_44 : f32 to vector<8x32xf32>
      %c0_45 = arith.constant 0 : index
      %c0_46 = arith.constant 0 : index
      %180 = vector.load %arg7[%c0_45, %c0_46] : memref<8x32xf32, #tpu.memory_space<vmem>>, vector<8x32xf32>
      tpu.vector_store %arg7[%c0_45, %c0_46], %179 {strides = array<i32>} : memref<8x32xf32, #tpu.memory_space<vmem>>, vector<8x32xf32>,
      %cst_47 = arith.constant 0.000000e+00 : f32
      %181 = vector.broadcast %cst_47 : f32 to vector<8x32xf32>
      %c0_48 = arith.constant 0 : index
      %c0_49 = arith.constant 0 : index
      %182 = vector.load %arg8[%c0_48, %c0_49] : memref<8x32xf32, #tpu.memory_space<vmem>>, vector<8x32xf32>
      tpu.vector_store %arg8[%c0_48, %c0_49], %181 {strides = array<i32>} : memref<8x32xf32, #tpu.memory_space<vmem>>, vector<8x32xf32>,
    } else {
    }
    %c0 = arith.constant 0 : index
    %c0_1 = arith.constant 0 : index
    %3 = vector.load %arg3[%c0, %c0_1] : memref<32x128xf32, #tpu.memory_space<vmem>>, vector<32x128xf32>
    %c0_2 = arith.constant 0 : index
    %c0_3 = arith.constant 0 : index
    %4 = vector.load %arg7[%c0_2, %c0_3] : memref<8x32xf32, #tpu.memory_space<vmem>>, vector<8x32xf32>
    %c0_4 = arith.constant 0 : index
    %c0_5 = arith.constant 0 : index
    %5 = vector.load %arg8[%c0_4, %c0_5] : memref<8x32xf32, #tpu.memory_space<vmem>>, vector<8x32xf32>
    %c0_i32_6 = arith.constant 0 : i32
    %6 = arith.index_cast %c0_i32_6 : i32 to index
    %c0_7 = arith.constant 0 : index
    %c0_8 = arith.constant 0 : index
    %7 = vector.load %arg2[%6, %c0_7, %c0_8] : memref<8x8x128xf32, #tpu.memory_space<vmem>>, vector<1x8x128xf32>
    %8 = vector.shape_cast %7 : vector<1x8x128xf32> to vector<8x128xf32>
    %cst = arith.constant dense<0.000000e+00> : vector<8x128xf32>
    %9 = tpu.matmul %4, %3, %cst {dimension_numbers = #tpu.dot_dimension_numbers<[1], [0], [0], [1], [0, 0, 1, 1], [], []>} : vector<8x32xf32>, vector<32x128xf32>, vector<8x128xf32> -> vector<8x128xf32>
    %10 = arith.addf %8, %9 : vector<8x128xf32>
    %11 = vector.extract_strided_slice %10 {offsets = [0, 0], sizes = [8, 96], strides = [1, 1]} : vector<8x128xf32> to vector<8x96xf32>
    %12 = arith.negf %11 : vector<8x96xf32>
    %13 = math.exp %12 : vector<8x96xf32>
    %cst_9 = arith.constant 1.000000e+00 : f32
    %14 = vector.broadcast %cst_9 : f32 to vector<8x96xf32>
    %15 = arith.addf %14, %13 : vector<8x96xf32>
    %16 = arith.divf %14, %15 : vector<8x96xf32>
    %17 = vector.extract_strided_slice %10 {offsets = [0, 96], sizes = [8, 32], strides = [1, 1]} : vector<8x128xf32> to vector<8x32xf32>
    %18 = math.tanh %17 : vector<8x32xf32>
    %19 = vector.extract_strided_slice %16 {offsets = [0, 0], sizes = [8, 32], strides = [1, 1]} : vector<8x96xf32> to vector<8x32xf32>
    %20 = vector.extract_strided_slice %16 {offsets = [0, 32], sizes = [8, 32], strides = [1, 1]} : vector<8x96xf32> to vector<8x32xf32>
    %21 = vector.extract_strided_slice %16 {offsets = [0, 64], sizes = [8, 32], strides = [1, 1]} : vector<8x96xf32> to vector<8x32xf32>
    %22 = arith.mulf %20, %5 : vector<8x32xf32>
    %23 = arith.mulf %19, %18 : vector<8x32xf32>
    %24 = arith.addf %22, %23 : vector<8x32xf32>
    %25 = math.tanh %24 : vector<8x32xf32>
    %26 = arith.mulf %21, %25 : vector<8x32xf32>
    %c1_i32 = arith.constant 1 : i32
    %27 = arith.index_cast %c1_i32 : i32 to index
    %c0_10 = arith.constant 0 : index
    %c0_11 = arith.constant 0 : index
    %28 = vector.load %arg2[%27, %c0_10, %c0_11] : memref<8x8x128xf32, #tpu.memory_space<vmem>>, vector<1x8x128xf32>
    %29 = vector.shape_cast %28 : vector<1x8x128xf32> to vector<8x128xf32>
    %cst_12 = arith.constant dense<0.000000e+00> : vector<8x128xf32>
    %30 = tpu.matmul %26, %3, %cst_12 {dimension_numbers = #tpu.dot_dimension_numbers<[1], [0], [0], [1], [0, 0, 1, 1], [], []>} : vector<8x32xf32>, vector<32x128xf32>, vector<8x128xf32> -> vector<8x128xf32>
    %31 = arith.addf %29, %30 : vector<8x128xf32>
    %32 = vector.extract_strided_slice %31 {offsets = [0, 0], sizes = [8, 96], strides = [1, 1]} : vector<8x128xf32> to vector<8x96xf32>
    %33 = arith.negf %32 : vector<8x96xf32>
    %34 = math.exp %33 : vector<8x96xf32>
    %cst_13 = arith.constant 1.000000e+00 : f32
    %35 = vector.broadcast %cst_13 : f32 to vector<8x96xf32>
    %36 = arith.addf %35, %34 : vector<8x96xf32>
    %37 = arith.divf %35, %36 : vector<8x96xf32>
    %38 = vector.extract_strided_slice %31 {offsets = [0, 96], sizes = [8, 32], strides = [1, 1]} : vector<8x128xf32> to vector<8x32xf32>
    %39 = math.tanh %38 : vector<8x32xf32>
    %40 = vector.extract_strided_slice %37 {offsets = [0, 0], sizes = [8, 32], strides = [1, 1]} : vector<8x96xf32> to vector<8x32xf32>
    %41 = vector.extract_strided_slice %37 {offsets = [0, 32], sizes = [8, 32], strides = [1, 1]} : vector<8x96xf32> to vector<8x32xf32>
    %42 = vector.extract_strided_slice %37 {offsets = [0, 64], sizes = [8, 32], strides = [1, 1]} : vector<8x96xf32> to vector<8x32xf32>
    %43 = arith.mulf %41, %24 : vector<8x32xf32>
    %44 = arith.mulf %40, %39 : vector<8x32xf32>
    %45 = arith.addf %43, %44 : vector<8x32xf32>
    %46 = math.tanh %45 : vector<8x32xf32>
    %47 = arith.mulf %42, %46 : vector<8x32xf32>
    %c2_i32 = arith.constant 2 : i32
    %48 = arith.index_cast %c2_i32 : i32 to index
    %c0_14 = arith.constant 0 : index
    %c0_15 = arith.constant 0 : index
    %49 = vector.load %arg2[%48, %c0_14, %c0_15] : memref<8x8x128xf32, #tpu.memory_space<vmem>>, vector<1x8x128xf32>
    %50 = vector.shape_cast %49 : vector<1x8x128xf32> to vector<8x128xf32>
    %cst_16 = arith.constant dense<0.000000e+00> : vector<8x128xf32>
    %51 = tpu.matmul %47, %3, %cst_16 {dimension_numbers = #tpu.dot_dimension_numbers<[1], [0], [0], [1], [0, 0, 1, 1], [], []>} : vector<8x32xf32>, vector<32x128xf32>, vector<8x128xf32> -> vector<8x128xf32>
    %52 = arith.addf %50, %51 : vector<8x128xf32>
    %53 = vector.extract_strided_slice %52 {offsets = [0, 0], sizes = [8, 96], strides = [1, 1]} : vector<8x128xf32> to vector<8x96xf32>
    %54 = arith.negf %53 : vector<8x96xf32>
    %55 = math.exp %54 : vector<8x96xf32>
    %cst_17 = arith.constant 1.000000e+00 : f32
    %56 = vector.broadcast %cst_17 : f32 to vector<8x96xf32>
    %57 = arith.addf %56, %55 : vector<8x96xf32>
    %58 = arith.divf %56, %57 : vector<8x96xf32>
    %59 = vector.extract_strided_slice %52 {offsets = [0, 96], sizes = [8, 32], strides = [1, 1]} : vector<8x128xf32> to vector<8x32xf32>
    %60 = math.tanh %59 : vector<8x32xf32>
    %61 = vector.extract_strided_slice %58 {offsets = [0, 0], sizes = [8, 32], strides = [1, 1]} : vector<8x96xf32> to vector<8x32xf32>
    %62 = vector.extract_strided_slice %58 {offsets = [0, 32], sizes = [8, 32], strides = [1, 1]} : vector<8x96xf32> to vector<8x32xf32>
    %63 = vector.extract_strided_slice %58 {offsets = [0, 64], sizes = [8, 32], strides = [1, 1]} : vector<8x96xf32> to vector<8x32xf32>
    %64 = arith.mulf %62, %45 : vector<8x32xf32>
    %65 = arith.mulf %61, %60 : vector<8x32xf32>
    %66 = arith.addf %64, %65 : vector<8x32xf32>
    %67 = math.tanh %66 : vector<8x32xf32>
    %68 = arith.mulf %63, %67 : vector<8x32xf32>
    %c3_i32 = arith.constant 3 : i32
    %69 = arith.index_cast %c3_i32 : i32 to index
    %c0_18 = arith.constant 0 : index
    %c0_19 = arith.constant 0 : index
    %70 = vector.load %arg2[%69, %c0_18, %c0_19] : memref<8x8x128xf32, #tpu.memory_space<vmem>>, vector<1x8x128xf32>
    %71 = vector.shape_cast %70 : vector<1x8x128xf32> to vector<8x128xf32>
    %cst_20 = arith.constant dense<0.000000e+00> : vector<8x128xf32>
    %72 = tpu.matmul %68, %3, %cst_20 {dimension_numbers = #tpu.dot_dimension_numbers<[1], [0], [0], [1], [0, 0, 1, 1], [], []>} : vector<8x32xf32>, vector<32x128xf32>, vector<8x128xf32> -> vector<8x128xf32>
    %73 = arith.addf %71, %72 : vector<8x128xf32>
    %74 = vector.extract_strided_slice %73 {offsets = [0, 0], sizes = [8, 96], strides = [1, 1]} : vector<8x128xf32> to vector<8x96xf32>
    %75 = arith.negf %74 : vector<8x96xf32>
    %76 = math.exp %75 : vector<8x96xf32>
    %cst_21 = arith.constant 1.000000e+00 : f32
    %77 = vector.broadcast %cst_21 : f32 to vector<8x96xf32>
    %78 = arith.addf %77, %76 : vector<8x96xf32>
    %79 = arith.divf %77, %78 : vector<8x96xf32>
    %80 = vector.extract_strided_slice %73 {offsets = [0, 96], sizes = [8, 32], strides = [1, 1]} : vector<8x128xf32> to vector<8x32xf32>
    %81 = math.tanh %80 : vector<8x32xf32>
    %82 = vector.extract_strided_slice %79 {offsets = [0, 0], sizes = [8, 32], strides = [1, 1]} : vector<8x96xf32> to vector<8x32xf32>
    %83 = vector.extract_strided_slice %79 {offsets = [0, 32], sizes = [8, 32], strides = [1, 1]} : vector<8x96xf32> to vector<8x32xf32>
    %84 = vector.extract_strided_slice %79 {offsets = [0, 64], sizes = [8, 32], strides = [1, 1]} : vector<8x96xf32> to vector<8x32xf32>
    %85 = arith.mulf %83, %66 : vector<8x32xf32>
    %86 = arith.mulf %82, %81 : vector<8x32xf32>
    %87 = arith.addf %85, %86 : vector<8x32xf32>
    %88 = math.tanh %87 : vector<8x32xf32>
    %89 = arith.mulf %84, %88 : vector<8x32xf32>
    %c4_i32 = arith.constant 4 : i32
    %90 = arith.index_cast %c4_i32 : i32 to index
    %c0_22 = arith.constant 0 : index
    %c0_23 = arith.constant 0 : index
    %91 = vector.load %arg2[%90, %c0_22, %c0_23] : memref<8x8x128xf32, #tpu.memory_space<vmem>>, vector<1x8x128xf32>
    %92 = vector.shape_cast %91 : vector<1x8x128xf32> to vector<8x128xf32>
    %cst_24 = arith.constant dense<0.000000e+00> : vector<8x128xf32>
    %93 = tpu.matmul %89, %3, %cst_24 {dimension_numbers = #tpu.dot_dimension_numbers<[1], [0], [0], [1], [0, 0, 1, 1], [], []>} : vector<8x32xf32>, vector<32x128xf32>, vector<8x128xf32> -> vector<8x128xf32>
    %94 = arith.addf %92, %93 : vector<8x128xf32>
    %95 = vector.extract_strided_slice %94 {offsets = [0, 0], sizes = [8, 96], strides = [1, 1]} : vector<8x128xf32> to vector<8x96xf32>
    %96 = arith.negf %95 : vector<8x96xf32>
    %97 = math.exp %96 : vector<8x96xf32>
    %cst_25 = arith.constant 1.000000e+00 : f32
    %98 = vector.broadcast %cst_25 : f32 to vector<8x96xf32>
    %99 = arith.addf %98, %97 : vector<8x96xf32>
    %100 = arith.divf %98, %99 : vector<8x96xf32>
    %101 = vector.extract_strided_slice %94 {offsets = [0, 96], sizes = [8, 32], strides = [1, 1]} : vector<8x128xf32> to vector<8x32xf32>
    %102 = math.tanh %101 : vector<8x32xf32>
    %103 = vector.extract_strided_slice %100 {offsets = [0, 0], sizes = [8, 32], strides = [1, 1]} : vector<8x96xf32> to vector<8x32xf32>
    %104 = vector.extract_strided_slice %100 {offsets = [0, 32], sizes = [8, 32], strides = [1, 1]} : vector<8x96xf32> to vector<8x32xf32>
    %105 = vector.extract_strided_slice %100 {offsets = [0, 64], sizes = [8, 32], strides = [1, 1]} : vector<8x96xf32> to vector<8x32xf32>
    %106 = arith.mulf %104, %87 : vector<8x32xf32>
    %107 = arith.mulf %103, %102 : vector<8x32xf32>
    %108 = arith.addf %106, %107 : vector<8x32xf32>
    %109 = math.tanh %108 : vector<8x32xf32>
    %110 = arith.mulf %105, %109 : vector<8x32xf32>
    %c5_i32 = arith.constant 5 : i32
    %111 = arith.index_cast %c5_i32 : i32 to index
    %c0_26 = arith.constant 0 : index
    %c0_27 = arith.constant 0 : index
    %112 = vector.load %arg2[%111, %c0_26, %c0_27] : memref<8x8x128xf32, #tpu.memory_space<vmem>>, vector<1x8x128xf32>
    %113 = vector.shape_cast %112 : vector<1x8x128xf32> to vector<8x128xf32>
    %cst_28 = arith.constant dense<0.000000e+00> : vector<8x128xf32>
    %114 = tpu.matmul %110, %3, %cst_28 {dimension_numbers = #tpu.dot_dimension_numbers<[1], [0], [0], [1], [0, 0, 1, 1], [], []>} : vector<8x32xf32>, vector<32x128xf32>, vector<8x128xf32> -> vector<8x128xf32>
    %115 = arith.addf %113, %114 : vector<8x128xf32>
    %116 = vector.extract_strided_slice %115 {offsets = [0, 0], sizes = [8, 96], strides = [1, 1]} : vector<8x128xf32> to vector<8x96xf32>
    %117 = arith.negf %116 : vector<8x96xf32>
    %118 = math.exp %117 : vector<8x96xf32>
    %cst_29 = arith.constant 1.000000e+00 : f32
    %119 = vector.broadcast %cst_29 : f32 to vector<8x96xf32>
    %120 = arith.addf %119, %118 : vector<8x96xf32>
    %121 = arith.divf %119, %120 : vector<8x96xf32>
    %122 = vector.extract_strided_slice %115 {offsets = [0, 96], sizes = [8, 32], strides = [1, 1]} : vector<8x128xf32> to vector<8x32xf32>
    %123 = math.tanh %122 : vector<8x32xf32>
    %124 = vector.extract_strided_slice %121 {offsets = [0, 0], sizes = [8, 32], strides = [1, 1]} : vector<8x96xf32> to vector<8x32xf32>
    %125 = vector.extract_strided_slice %121 {offsets = [0, 32], sizes = [8, 32], strides = [1, 1]} : vector<8x96xf32> to vector<8x32xf32>
    %126 = vector.extract_strided_slice %121 {offsets = [0, 64], sizes = [8, 32], strides = [1, 1]} : vector<8x96xf32> to vector<8x32xf32>
    %127 = arith.mulf %125, %108 : vector<8x32xf32>
    %128 = arith.mulf %124, %123 : vector<8x32xf32>
    %129 = arith.addf %127, %128 : vector<8x32xf32>
    %130 = math.tanh %129 : vector<8x32xf32>
    %131 = arith.mulf %126, %130 : vector<8x32xf32>
    %c6_i32 = arith.constant 6 : i32
    %132 = arith.index_cast %c6_i32 : i32 to index
    %c0_30 = arith.constant 0 : index
    %c0_31 = arith.constant 0 : index
    %133 = vector.load %arg2[%132, %c0_30, %c0_31] : memref<8x8x128xf32, #tpu.memory_space<vmem>>, vector<1x8x128xf32>
    %134 = vector.shape_cast %133 : vector<1x8x128xf32> to vector<8x128xf32>
    %cst_32 = arith.constant dense<0.000000e+00> : vector<8x128xf32>
    %135 = tpu.matmul %131, %3, %cst_32 {dimension_numbers = #tpu.dot_dimension_numbers<[1], [0], [0], [1], [0, 0, 1, 1], [], []>} : vector<8x32xf32>, vector<32x128xf32>, vector<8x128xf32> -> vector<8x128xf32>
    %136 = arith.addf %134, %135 : vector<8x128xf32>
    %137 = vector.extract_strided_slice %136 {offsets = [0, 0], sizes = [8, 96], strides = [1, 1]} : vector<8x128xf32> to vector<8x96xf32>
    %138 = arith.negf %137 : vector<8x96xf32>
    %139 = math.exp %138 : vector<8x96xf32>
    %cst_33 = arith.constant 1.000000e+00 : f32
    %140 = vector.broadcast %cst_33 : f32 to vector<8x96xf32>
    %141 = arith.addf %140, %139 : vector<8x96xf32>
    %142 = arith.divf %140, %141 : vector<8x96xf32>
    %143 = vector.extract_strided_slice %136 {offsets = [0, 96], sizes = [8, 32], strides = [1, 1]} : vector<8x128xf32> to vector<8x32xf32>
    %144 = math.tanh %143 : vector<8x32xf32>
    %145 = vector.extract_strided_slice %142 {offsets = [0, 0], sizes = [8, 32], strides = [1, 1]} : vector<8x96xf32> to vector<8x32xf32>
    %146 = vector.extract_strided_slice %142 {offsets = [0, 32], sizes = [8, 32], strides = [1, 1]} : vector<8x96xf32> to vector<8x32xf32>
    %147 = vector.extract_strided_slice %142 {offsets = [0, 64], sizes = [8, 32], strides = [1, 1]} : vector<8x96xf32> to vector<8x32xf32>
    %148 = arith.mulf %146, %129 : vector<8x32xf32>
    %149 = arith.mulf %145, %144 : vector<8x32xf32>
    %150 = arith.addf %148, %149 : vector<8x32xf32>
    %151 = math.tanh %150 : vector<8x32xf32>
    %152 = arith.mulf %147, %151 : vector<8x32xf32>
    %c7_i32 = arith.constant 7 : i32
    %153 = arith.index_cast %c7_i32 : i32 to index
    %c0_34 = arith.constant 0 : index
    %c0_35 = arith.constant 0 : index
    %154 = vector.load %arg2[%153, %c0_34, %c0_35] : memref<8x8x128xf32, #tpu.memory_space<vmem>>, vector<1x8x128xf32>
    %155 = vector.shape_cast %154 : vector<1x8x128xf32> to vector<8x128xf32>
    %cst_36 = arith.constant dense<0.000000e+00> : vector<8x128xf32>
    %156 = tpu.matmul %152, %3, %cst_36 {dimension_numbers = #tpu.dot_dimension_numbers<[1], [0], [0], [1], [0, 0, 1, 1], [], []>} : vector<8x32xf32>, vector<32x128xf32>, vector<8x128xf32> -> vector<8x128xf32>
    %157 = arith.addf %155, %156 : vector<8x128xf32>
    %158 = vector.extract_strided_slice %157 {offsets = [0, 0], sizes = [8, 96], strides = [1, 1]} : vector<8x128xf32> to vector<8x96xf32>
    %159 = arith.negf %158 : vector<8x96xf32>
    %160 = math.exp %159 : vector<8x96xf32>
    %cst_37 = arith.constant 1.000000e+00 : f32
    %161 = vector.broadcast %cst_37 : f32 to vector<8x96xf32>
    %162 = arith.addf %161, %160 : vector<8x96xf32>
    %163 = arith.divf %161, %162 : vector<8x96xf32>
    %164 = vector.extract_strided_slice %157 {offsets = [0, 96], sizes = [8, 32], strides = [1, 1]} : vector<8x128xf32> to vector<8x32xf32>
    %165 = math.tanh %164 : vector<8x32xf32>
    %166 = vector.extract_strided_slice %163 {offsets = [0, 0], sizes = [8, 32], strides = [1, 1]} : vector<8x96xf32> to vector<8x32xf32>
    %167 = vector.extract_strided_slice %163 {offsets = [0, 32], sizes = [8, 32], strides = [1, 1]} : vector<8x96xf32> to vector<8x32xf32>
    %168 = vector.extract_strided_slice %163 {offsets = [0, 64], sizes = [8, 32], strides = [1, 1]} : vector<8x96xf32> to vector<8x32xf32>
    %169 = arith.mulf %167, %150 : vector<8x32xf32>
    %170 = arith.mulf %166, %165 : vector<8x32xf32>
    %171 = arith.addf %169, %170 : vector<8x32xf32>
    %172 = math.tanh %171 : vector<8x32xf32>
    %173 = arith.mulf %168, %172 : vector<8x32xf32>
    %c8_i32 = arith.constant 8 : i32
    %c0_38 = arith.constant 0 : index
    %c0_39 = arith.constant 0 : index
    %174 = vector.load %arg7[%c0_38, %c0_39] : memref<8x32xf32, #tpu.memory_space<vmem>>, vector<8x32xf32>
    tpu.vector_store %arg7[%c0_38, %c0_39], %173 {strides = array<i32>} : memref<8x32xf32, #tpu.memory_space<vmem>>, vector<8x32xf32>,
    %c0_40 = arith.constant 0 : index
    %c0_41 = arith.constant 0 : index
    %175 = vector.load %arg8[%c0_40, %c0_41] : memref<8x32xf32, #tpu.memory_space<vmem>>, vector<8x32xf32>
    tpu.vector_store %arg8[%c0_40, %c0_41], %171 {strides = array<i32>} : memref<8x32xf32, #tpu.memory_space<vmem>>, vector<8x32xf32>,
    %c0_i32_42 = arith.constant 0 : i32
    %176 = arith.cmpi eq, %arg1, %c0_i32_42 : i32
    %177 = arith.extui %176 : i1 to i32
    %c0_i32_43 = arith.constant 0 : i32
    %178 = arith.cmpi ne, %177, %c0_i32_43 : i32
    scf.if %178 {
      %c0_44 = arith.constant 0 : index
      %c0_45 = arith.constant 0 : index
      %179 = vector.load %arg4[%c0_44, %c0_45] : memref<32x20xf32, #tpu.memory_space<vmem>>, vector<32x20xf32>
      %cst_46 = arith.constant dense<0.000000e+00> : vector<8x20xf32>
      %180 = tpu.matmul %173, %179, %cst_46 {dimension_numbers = #tpu.dot_dimension_numbers<[1], [0], [0], [1], [0, 0, 1, 1], [], []>} : vector<8x32xf32>, vector<32x20xf32>, vector<8x20xf32> -> vector<8x20xf32>
      %c0_47 = arith.constant 0 : index
      %c0_48 = arith.constant 0 : index
      %181 = vector.load %arg5[%c0_47, %c0_48] : memref<1x20xf32, #tpu.memory_space<vmem>>, vector<1x20xf32>
      %182 = vector.broadcast %181 : vector<1x20xf32> to vector<8x20xf32>
      %183 = arith.addf %180, %182 : vector<8x20xf32>
      %c0_49 = arith.constant 0 : index
      %c0_50 = arith.constant 0 : index
      %184 = vector.load %arg6[%c0_49, %c0_50] : memref<8x20xf32, #tpu.memory_space<vmem>>, vector<8x20xf32>
      tpu.vector_store %arg6[%c0_49, %c0_50], %183 {strides = array<i32>} : memref<8x20xf32, #tpu.memory_space<vmem>>, vector<8x20xf32>,
    } else {
    }
    return
  }
  func.func @transform_0(%arg0: i32, %arg1: i32) -> (i32, i32, i32) {
    %c0_i32 = arith.constant 0 : i32
    %c0_i32_0 = arith.constant 0 : i32
    return %arg1, %arg0, %c0_i32 : i32, i32, i32
  }
  func.func @transform_1(%arg0: i32, %arg1: i32) -> (i32, i32) {
    %c0_i32 = arith.constant 0 : i32
    %c0_i32_0 = arith.constant 0 : i32
    %c0_i32_1 = arith.constant 0 : i32
    return %c0_i32, %c0_i32_0 : i32, i32
  }
  func.func @transform_2(%arg0: i32, %arg1: i32) -> (i32, i32) {
    %c0_i32 = arith.constant 0 : i32
    %c0_i32_0 = arith.constant 0 : i32
    %c0_i32_1 = arith.constant 0 : i32
    return %c0_i32, %c0_i32_0 : i32, i32
  }
  func.func @transform_3(%arg0: i32, %arg1: i32) -> (i32, i32) {
    %c0_i32 = arith.constant 0 : i32
    %c0_i32_0 = arith.constant 0 : i32
    %c0_i32_1 = arith.constant 0 : i32
    return %c0_i32, %c0_i32_0 : i32, i32
  }
  func.func @transform_4(%arg0: i32, %arg1: i32) -> (i32, i32) {
    %c0_i32 = arith.constant 0 : i32
    %c0_i32_0 = arith.constant 0 : i32
    return %arg0, %c0_i32 : i32, i32
  }
}

</mosaic_0001>

<llo_original>
// kernel: lstm_forecast_forward.1
$region0: #{lstm_forecast_forward.1}
  #allocation0 [shape = 'u32[]', space=smem, size = 0x4, offset = 0x4, fixed_abs, tag = 'smem constant byte address 0x4 - core index']
  #allocation1 [shape = 'u32[144,128]{1,0:T(1,128)}', space=vmem, size = 0x12000, scoped, tag = 'internal scratch']
  #allocation2 [shape = 'f32[8,32]{1,0:T(8,128)}', space=vmem, size = 0x1000, scoped, tag = 'scratch operand']
  #allocation3 [shape = 'f32[8,32]{1,0:T(8,128)}', space=vmem, size = 0x1000, scoped, tag = 'scratch operand']
  %s0 = inlined_call_operand.vmem [shape: f32[8,8,128], index: 0, kind: input, shape index: {}]
  %s1 = inlined_call_operand.vmem [shape: f32[32,128], index: 1, kind: input, shape index: {}]
  %s2 = inlined_call_operand.vmem [shape: f32[32,20], index: 2, kind: input, shape index: {}]
  %s3 = inlined_call_operand.vmem [shape: f32[1,20], index: 3, kind: input, shape index: {}]
  %s4 = inlined_call_operand.vmem [shape: f32[8,20], index: 4, kind: output, shape index: {}]
  %s5 = sld [smem:[#allocation0]]
  $region34: #{lstm_forecast_forward.1} parent=0
    _
  %s7 = ssub.s32 1, %s5
  %s8 = scalar_select 0, %s7, %s5
  // Predicated region
  $region2: #{lstm_forecast_forward.1} parent=0 // pred_check
    _
  $region3: #{lstm_forecast_forward.1} parent=0 // pred_check_branch
    %10 = sbr.rel (0) target = $region5
  $region4: #{lstm_forecast_forward.1} parent=0 // pred_region
    _
  $region5: #{lstm_forecast_forward.1} parent=0 // pred_fallthru
    _
  // Predicated region
  $region6: #{lstm_forecast_forward.1} parent=0 // pred_check
    _
  $region7: #{lstm_forecast_forward.1} parent=0 // pred_check_branch
    %12 = sbr.rel (0) target = $region9
  $region8: #{lstm_forecast_forward.1} parent=0 // pred_region
    _
  $region9: #{lstm_forecast_forward.1} parent=0 // pred_fallthru
    _
  // Predicated region
  $region10: #{lstm_forecast_forward.1} parent=0 // pred_check
    _
  $region11: #{lstm_forecast_forward.1} parent=0 // pred_check_branch
    %14 = sbr.rel (0) target = $region13
  $region12: #{lstm_forecast_forward.1} parent=0 // pred_region
    _
  $region13: #{lstm_forecast_forward.1} parent=0 // pred_fallthru
    _
  // Predicated region
  $region14: #{lstm_forecast_forward.1} parent=0 // pred_check
    _
  $region15: #{lstm_forecast_forward.1} parent=0 // pred_check_branch
    %16 = sbr.rel (0) target = $region17
  $region16: #{lstm_forecast_forward.1} parent=0 // pred_region
    _
  $region17: #{lstm_forecast_forward.1} parent=0 // pred_fallthru
    _
  %p17 = scmp.eq.s32.totalorder 0, 0
  // Predicated region
  $region18: #{lstm_forecast_forward.1} parent=0 // pred_check
    %p18 = pneg %p17
  $region19: #{lstm_forecast_forward.1} parent=0 // pred_check_branch
    %20 = sbr.rel (%p18) target = $region21
  $region20: #{lstm_forecast_forward.1} parent=0 // pred_region
    %vm21 = vcmask 261120
    %22 = vst.msk [vmem:[#allocation2] sm:$0xff] %vm21, 0.0
    %23 = vst.msk [vmem:[#allocation3] sm:$0xff] %vm21, 0.0
  $region21: #{lstm_forecast_forward.1} parent=0 // pred_fallthru
    _
  %v24 = vld [vmem:[%s1] sm:$0xff]
  %v25 = vld [vmem:[%s1 + $0x8] sm:$0xff]
  %v26 = vld [vmem:[%s1 + $0x10] sm:$0xff]
  %v27 = vld [vmem:[%s1 + $0x18] sm:$0xff]
  %v28 = vld [vmem:[#allocation2] sm:$0xff]
  %v29 = vld [vmem:[#allocation3] sm:$0xff]
  %v30 = vld [vmem:[%s0] sm:$0xff]
  %vm31 = vcmask 261120
  %v33 = vsel %vm31, %v28, 0
  %35 = vmatprep.subr.mxu0 0.0
  %36 = vmatpush1.msra.mxu0 %v24
  %37 = vmatprep.subr.mxu0 0.0
  %38 = vmatpush1.msra.mxu0 %v25
  %39 = vmatprep.subr.mxu0 0.0
  %40 = vmatpush1.msra.mxu0 %v26
  %41 = vmatprep.subr.mxu0 0.0
  %42 = vmatpush1.msra.mxu0 %v27
  %43 = vmatprep.subr.mxu0 0.0
  %44 = vmatpush1.msra.mxu0 0.0
  %45 = vmatprep.subr.mxu0 0.0
  %46 = vmatpush1.msra.mxu0 0.0
  %47 = vmatprep.subr.mxu0 0.0
  %48 = vmatpush1.msra.mxu0 0.0
  %49 = vmatprep.subr.mxu0 0.0
  %50 = vmatpush1.msra.mxu0 0.0
  %51 = vmatprep.subr.mxu0 0.0
  %52 = vmatpush1.msra.mxu0 0.0
  %53 = vmatprep.subr.mxu0 0.0
  %54 = vmatpush1.msra.mxu0 0.0
  %55 = vmatprep.subr.mxu0 0.0
  %56 = vmatpush1.msra.mxu0 0.0
  %57 = vmatprep.subr.mxu0 0.0
  %58 = vmatpush1.msra.mxu0 0.0
  %59 = vmatprep.subr.mxu0 0.0
  %60 = vmatpush1.msra.mxu0 0.0
  %61 = vmatprep.subr.mxu0 0.0
  %62 = vmatpush1.msra.mxu0 0.0
  %63 = vmatprep.subr.mxu0 0.0
  %64 = vmatpush1.msra.mxu0 0.0
  %65 = vmatprep.subr.mxu0 0.0
  %66 = vmatpush1.msra.mxu0 0.0
  %67 = vmatprep.subr.mxu0 0.0
  %68 = vmatpush1.msra.mxu0 0.0
  %69 = vmatprep.subr.mxu0 0.0
  %70 = vmatpush1.msra.mxu0 0.0
  %71 = vmatprep.subr.mxu0 0.0
  %72 = vmatpush1.msra.mxu0 0.0
  %73 = vmatprep.subr.mxu0 0.0
  %74 = vmatpush1.msra.mxu0 0.0
  %75 = vmatprep.subr.mxu0 0.0
  %76 = vmatpush1.msra.mxu0 0.0
  %77 = vmatprep.subr.mxu0 0.0
  %78 = vmatpush1.msra.mxu0 0.0
  %79 = vmatprep.subr.mxu0 0.0
  %80 = vmatpush1.msra.mxu0 0.0
  %81 = vmatprep.subr.mxu0 0.0
  %82 = vmatpush1.msra.mxu0 0.0
  %83 = vmatprep.subr.mxu0 0.0
  %84 = vmatpush1.msra.mxu0 0.0
  %85 = vmatprep.subr.mxu0 0.0
  %86 = vmatpush1.msra.mxu0 0.0
  %87 = vmatprep.subr.mxu0 0.0
  %88 = vmatpush1.msra.mxu0 0.0
  %89 = vmatprep.subr.mxu0 0.0
  %90 = vmatpush1.msra.mxu0 0.0
  %91 = vmatprep.subr.mxu0 0.0
  %92 = vmatpush1.msra.mxu0 0.0
  %93 = vmatprep.subr.mxu0 0.0
  %94 = vmatpush1.msra.mxu0 0.0
  %95 = vmatprep.subr.mxu0 0.0
  %96 = vmatpush1.msra.mxu0 0.0
  %97 = vmatprep.subr.mxu0 0.0
  %98 = vmatpush1.msra.mxu0 0.0
  %99 = vmatprep.mubr.f32.mxu0 0.0
  %100 = vmatmul.mubr.f32.gmra.mrb[0].mxu0 %v33
  %v101 = vpop.f32.mrb[0].mxu0
  %v102 = vadd.f32 0.0, %v101
  %v103 = vpop.f32.mrb[0].mxu0
  %104 = vdwg.mxu0
  %v105 = vadd.f32 %v30, %v102
  %v106 = vxor.u32 %v105, 2147483648
  %v107 = vmul.f32 %v106, 1.442695
  %v108 = vpow.pop %v107
  %v109 = vadd.f32 %v108, 1.0
  %v110 = vrcp.pop %v109
  %v111 = vmul.f32 1.0, %v110
  %v112 = vtanh.pop %v105
  %114 = vrot.lane.b32.xlu0 %v29, 32
  %v115 = vpop.permute.xlu0 %114
  %v117 = vmul.f32 %v111, %v115
  %119 = vrot.lane.b32.xlu0 %v112, 32
  %v120 = vpop.permute.xlu0 %119
  %v122 = vmul.f32 %v111, %v120
  %124 = vrot.lane.b32.xlu0 %v122, 32
  %v125 = vpop.permute.xlu0 %124
  %v127 = vadd.f32 %v117, %v125
  %v128 = vtanh.pop %v127
  %130 = vrot.lane.b32.xlu0 %v128, 32
  %v131 = vpop.permute.xlu0 %130
  %v133 = vmul.f32 %v111, %v131
  %s134 = scalar_lea.vmem %s0, 8
  %v135 = vld [vmem:[%s134] sm:$0xff]
  %137 = vrot.lane.b32.xlu0 %v133, 64
  %v138 = vpop.permute.xlu0 %137
  %v139 = vsel %vm31, %v138, 0
  %141 = vmatprep.subr.mxu0 0.0
  %142 = vmatpush1.msra.mxu0 %v24
  %143 = vmatprep.subr.mxu0 0.0
  %144 = vmatpush1.msra.mxu0 %v25
  %145 = vmatprep.subr.mxu0 0.0
  %146 = vmatpush1.msra.mxu0 %v26
  %147 = vmatprep.subr.mxu0 0.0
  %148 = vmatpush1.msra.mxu0 %v27
  %149 = vmatprep.subr.mxu0 0.0
  %150 = vmatpush1.msra.mxu0 0.0
  %151 = vmatprep.subr.mxu0 0.0
  %152 = vmatpush1.msra.mxu0 0.0
  %153 = vmatprep.subr.mxu0 0.0
  %154 = vmatpush1.msra.mxu0 0.0
  %155 = vmatprep.subr.mxu0 0.0
  %156 = vmatpush1.msra.mxu0 0.0
  %157 = vmatprep.subr.mxu0 0.0
  %158 = vmatpush1.msra.mxu0 0.0
  %159 = vmatprep.subr.mxu0 0.0
  %160 = vmatpush1.msra.mxu0 0.0
  %161 = vmatprep.subr.mxu0 0.0
  %162 = vmatpush1.msra.mxu0 0.0
  %163 = vmatprep.subr.mxu0 0.0
  %164 = vmatpush1.msra.mxu0 0.0
  %165 = vmatprep.subr.mxu0 0.0
  %166 = vmatpush1.msra.mxu0 0.0
  %167 = vmatprep.subr.mxu0 0.0
  %168 = vmatpush1.msra.mxu0 0.0
  %169 = vmatprep.subr.mxu0 0.0
  %170 = vmatpush1.msra.mxu0 0.0
  %171 = vmatprep.subr.mxu0 0.0
  %172 = vmatpush1.msra.mxu0 0.0
  %173 = vmatprep.subr.mxu0 0.0
  %174 = vmatpush1.msra.mxu0 0.0
  %175 = vmatprep.subr.mxu0 0.0
  %176 = vmatpush1.msra.mxu0 0.0
  %177 = vmatprep.subr.mxu0 0.0
  %178 = vmatpush1.msra.mxu0 0.0
  %179 = vmatprep.subr.mxu0 0.0
  %180 = vmatpush1.msra.mxu0 0.0
  %181 = vmatprep.subr.mxu0 0.0
  %182 = vmatpush1.msra.mxu0 0.0
  %183 = vmatprep.subr.mxu0 0.0
  %184 = vmatpush1.msra.mxu0 0.0
  %185 = vmatprep.subr.mxu0 0.0
  %186 = vmatpush1.msra.mxu0 0.0
  %187 = vmatprep.subr.mxu0 0.0
  %188 = vmatpush1.msra.mxu0 0.0
  %189 = vmatprep.subr.mxu0 0.0
  %190 = vmatpush1.msra.mxu0 0.0
  %191 = vmatprep.subr.mxu0 0.0
  %192 = vmatpush1.msra.mxu0 0.0
  %193 = vmatprep.subr.mxu0 0.0
  %194 = vmatpush1.msra.mxu0 0.0
  %195 = vmatprep.subr.mxu0 0.0
  %196 = vmatpush1.msra.mxu0 0.0
  %197 = vmatprep.subr.mxu0 0.0
  %198 = vmatpush1.msra.mxu0 0.0
  %199 = vmatprep.subr.mxu0 0.0
  %200 = vmatpush1.msra.mxu0 0.0
  %201 = vmatprep.subr.mxu0 0.0
  %202 = vmatpush1.msra.mxu0 0.0
  %203 = vmatprep.subr.mxu0 0.0
  %204 = vmatpush1.msra.mxu0 0.0
  %205 = vmatprep.mubr.f32.mxu0 0.0
  %206 = vmatmul.mubr.f32.gmra.mrb[0].mxu0 %v139
  %v207 = vpop.f32.mrb[0].mxu0
  %v208 = vadd.f32 0.0, %v207
  %v209 = vpop.f32.mrb[0].mxu0
  %210 = vdwg.mxu0
  %v211 = vadd.f32 %v135, %v208
  %v212 = vxor.u32 %v211, 2147483648
  %v213 = vmul.f32 %v212, 1.442695
  %v214 = vpow.pop %v213
  %v215 = vadd.f32 %v214, 1.0
  %v216 = vrcp.pop %v215
  %v217 = vmul.f32 1.0, %v216
  %v218 = vtanh.pop %v211
  %v219 = vmul.f32 %v217, %v127
  %221 = vrot.lane.b32.xlu0 %v218, 32
  %v222 = vpop.permute.xlu0 %221
  %v224 = vmul.f32 %v217, %v222
  %226 = vrot.lane.b32.xlu0 %v224, 32
  %v227 = vpop.permute.xlu0 %226
  %v229 = vadd.f32 %v219, %v227
  %v230 = vtanh.pop %v229
  %232 = vrot.lane.b32.xlu0 %v230, 32
  %v233 = vpop.permute.xlu0 %232
  %v235 = vmul.f32 %v217, %v233
  %s236 = scalar_lea.vmem %s0, 16
  %v237 = vld [vmem:[%s236] sm:$0xff]
  %239 = vrot.lane.b32.xlu0 %v235, 64
  %v240 = vpop.permute.xlu0 %239
  %v241 = vsel %vm31, %v240, 0
  %243 = vmatprep.subr.mxu0 0.0
  %244 = vmatpush1.msra.mxu0 %v24
  %245 = vmatprep.subr.mxu0 0.0
  %246 = vmatpush1.msra.mxu0 %v25
  %247 = vmatprep.subr.mxu0 0.0
  %248 = vmatpush1.msra.mxu0 %v26
  %249 = vmatprep.subr.mxu0 0.0
  %250 = vmatpush1.msra.mxu0 %v27
  %251 = vmatprep.subr.mxu0 0.0
  %252 = vmatpush1.msra.mxu0 0.0
  %253 = vmatprep.subr.mxu0 0.0
  %254 = vmatpush1.msra.mxu0 0.0
  %255 = vmatprep.subr.mxu0 0.0
  %256 = vmatpush1.msra.mxu0 0.0
  %257 = vmatprep.subr.mxu0 0.0
  %258 = vmatpush1.msra.mxu0 0.0
  %259 = vmatprep.subr.mxu0 0.0
  %260 = vmatpush1.msra.mxu0 0.0
  %261 = vmatprep.subr.mxu0 0.0
  %262 = vmatpush1.msra.mxu0 0.0
  %263 = vmatprep.subr.mxu0 0.0
  %264 = vmatpush1.msra.mxu0 0.0
  %265 = vmatprep.subr.mxu0 0.0
  %266 = vmatpush1.msra.mxu0 0.0
  %267 = vmatprep.subr.mxu0 0.0
  %268 = vmatpush1.msra.mxu0 0.0
  %269 = vmatprep.subr.mxu0 0.0
  %270 = vmatpush1.msra.mxu0 0.0
  %271 = vmatprep.subr.mxu0 0.0
  %272 = vmatpush1.msra.mxu0 0.0
  %273 = vmatprep.subr.mxu0 0.0
  %274 = vmatpush1.msra.mxu0 0.0
  %275 = vmatprep.subr.mxu0 0.0
  %276 = vmatpush1.msra.mxu0 0.0
  %277 = vmatprep.subr.mxu0 0.0
  %278 = vmatpush1.msra.mxu0 0.0
  %279 = vmatprep.subr.mxu0 0.0
  %280 = vmatpush1.msra.mxu0 0.0
  %281 = vmatprep.subr.mxu0 0.0
  %282 = vmatpush1.msra.mxu0 0.0
  %283 = vmatprep.subr.mxu0 0.0
  %284 = vmatpush1.msra.mxu0 0.0
  %285 = vmatprep.subr.mxu0 0.0
  %286 = vmatpush1.msra.mxu0 0.0
  %287 = vmatprep.subr.mxu0 0.0
  %288 = vmatpush1.msra.mxu0 0.0
  %289 = vmatprep.subr.mxu0 0.0
  %290 = vmatpush1.msra.mxu0 0.0
  %291 = vmatprep.subr.mxu0 0.0
  %292 = vmatpush1.msra.mxu0 0.0
  %293 = vmatprep.subr.mxu0 0.0
  %294 = vmatpush1.msra.mxu0 0.0
  %295 = vmatprep.subr.mxu0 0.0
  %296 = vmatpush1.msra.mxu0 0.0
  %297 = vmatprep.subr.mxu0 0.0
  %298 = vmatpush1.msra.mxu0 0.0
  %299 = vmatprep.subr.mxu0 0.0
  %300 = vmatpush1.msra.mxu0 0.0
  %301 = vmatprep.subr.mxu0 0.0
  %302 = vmatpush1.msra.mxu0 0.0
  %303 = vmatprep.subr.mxu0 0.0
  %304 = vmatpush1.msra.mxu0 0.0
  %305 = vmatprep.subr.mxu0 0.0
  %306 = vmatpush1.msra.mxu0 0.0
  %307 = vmatprep.mubr.f32.mxu0 0.0
  %308 = vmatmul.mubr.f32.gmra.mrb[0].mxu0 %v241
  %v309 = vpop.f32.mrb[0].mxu0
  %v310 = vadd.f32 0.0, %v309
  %v311 = vpop.f32.mrb[0].mxu0
  %312 = vdwg.mxu0
  %v313 = vadd.f32 %v237, %v310
  %v314 = vxor.u32 %v313, 2147483648
  %v315 = vmul.f32 %v314, 1.442695
  %v316 = vpow.pop %v315
  %v317 = vadd.f32 %v316, 1.0
  %v318 = vrcp.pop %v317
  %v319 = vmul.f32 1.0, %v318
  %v320 = vtanh.pop %v313
  %v321 = vmul.f32 %v319, %v229
  %323 = vrot.lane.b32.xlu0 %v320, 32
  %v324 = vpop.permute.xlu0 %323
  %v326 = vmul.f32 %v319, %v324
  %328 = vrot.lane.b32.xlu0 %v326, 32
  %v329 = vpop.permute.xlu0 %328
  %v331 = vadd.f32 %v321, %v329
  %v332 = vtanh.pop %v331
  %334 = vrot.lane.b32.xlu0 %v332, 32
  %v335 = vpop.permute.xlu0 %334
  %v337 = vmul.f32 %v319, %v335
  %s338 = scalar_lea.vmem %s0, 24
  %v339 = vld [vmem:[%s338] sm:$0xff]
  %341 = vrot.lane.b32.xlu0 %v337, 64
  %v342 = vpop.permute.xlu0 %341
  %v343 = vsel %vm31, %v342, 0
  %345 = vmatprep.subr.mxu0 0.0
  %346 = vmatpush1.msra.mxu0 %v24
  %347 = vmatprep.subr.mxu0 0.0
  %348 = vmatpush1.msra.mxu0 %v25
  %349 = vmatprep.subr.mxu0 0.0
  %350 = vmatpush1.msra.mxu0 %v26
  %351 = vmatprep.subr.mxu0 0.0
  %352 = vmatpush1.msra.mxu0 %v27
  %353 = vmatprep.subr.mxu0 0.0
  %354 = vmatpush1.msra.mxu0 0.0
  %355 = vmatprep.subr.mxu0 0.0
  %356 = vmatpush1.msra.mxu0 0.0
  %357 = vmatprep.subr.mxu0 0.0
  %358 = vmatpush1.msra.mxu0 0.0
  %359 = vmatprep.subr.mxu0 0.0
  %360 = vmatpush1.msra.mxu0 0.0
  %361 = vmatprep.subr.mxu0 0.0
  %362 = vmatpush1.msra.mxu0 0.0
  %363 = vmatprep.subr.mxu0 0.0
  %364 = vmatpush1.msra.mxu0 0.0
  %365 = vmatprep.subr.mxu0 0.0
  %366 = vmatpush1.msra.mxu0 0.0
  %367 = vmatprep.subr.mxu0 0.0
  %368 = vmatpush1.msra.mxu0 0.0
  %369 = vmatprep.subr.mxu0 0.0
  %370 = vmatpush1.msra.mxu0 0.0
  %371 = vmatprep.subr.mxu0 0.0
  %372 = vmatpush1.msra.mxu0 0.0
  %373 = vmatprep.subr.mxu0 0.0
  %374 = vmatpush1.msra.mxu0 0.0
  %375 = vmatprep.subr.mxu0 0.0
  %376 = vmatpush1.msra.mxu0 0.0
  %377 = vmatprep.subr.mxu0 0.0
  %378 = vmatpush1.msra.mxu0 0.0
  %379 = vmatprep.subr.mxu0 0.0
  %380 = vmatpush1.msra.mxu0 0.0
  %381 = vmatprep.subr.mxu0 0.0
  %382 = vmatpush1.msra.mxu0 0.0
  %383 = vmatprep.subr.mxu0 0.0
  %384 = vmatpush1.msra.mxu0 0.0
  %385 = vmatprep.subr.mxu0 0.0
  %386 = vmatpush1.msra.mxu0 0.0
  %387 = vmatprep.subr.mxu0 0.0
  %388 = vmatpush1.msra.mxu0 0.0
  %389 = vmatprep.subr.mxu0 0.0
  %390 = vmatpush1.msra.mxu0 0.0
  %391 = vmatprep.subr.mxu0 0.0
  %392 = vmatpush1.msra.mxu0 0.0
  %393 = vmatprep.subr.mxu0 0.0
  %394 = vmatpush1.msra.mxu0 0.0
  %395 = vmatprep.subr.mxu0 0.0
  %396 = vmatpush1.msra.mxu0 0.0
  %397 = vmatprep.subr.mxu0 0.0
  %398 = vmatpush1.msra.mxu0 0.0
  %399 = vmatprep.subr.mxu0 0.0
  %400 = vmatpush1.msra.mxu0 0.0
  %401 = vmatprep.subr.mxu0 0.0
  %402 = vmatpush1.msra.mxu0 0.0
  %403 = vmatprep.subr.mxu0 0.0
  %404 = vmatpush1.msra.mxu0 0.0
  %405 = vmatprep.subr.mxu0 0.0
  %406 = vmatpush1.msra.mxu0 0.0
  %407 = vmatprep.subr.mxu0 0.0
  %408 = vmatpush1.msra.mxu0 0.0
  %409 = vmatprep.mubr.f32.mxu0 0.0
  %410 = vmatmul.mubr.f32.gmra.mrb[0].mxu0 %v343
  %v411 = vpop.f32.mrb[0].mxu0
  %v412 = vadd.f32 0.0, %v411
  %v413 = vpop.f32.mrb[0].mxu0
  %414 = vdwg.mxu0
  %v415 = vadd.f32 %v339, %v412
  %v416 = vxor.u32 %v415, 2147483648
  %v417 = vmul.f32 %v416, 1.442695
  %v418 = vpow.pop %v417
  %v419 = vadd.f32 %v418, 1.0
  %v420 = vrcp.pop %v419
  %v421 = vmul.f32 1.0, %v420
  %v422 = vtanh.pop %v415
  %v423 = vmul.f32 %v421, %v331
  %425 = vrot.lane.b32.xlu0 %v422, 32
  %v426 = vpop.permute.xlu0 %425
  %v428 = vmul.f32 %v421, %v426
  %430 = vrot.lane.b32.xlu0 %v428, 32
  %v431 = vpop.permute.xlu0 %430
  %v433 = vadd.f32 %v423, %v431
  %v434 = vtanh.pop %v433
  %436 = vrot.lane.b32.xlu0 %v434, 32
  %v437 = vpop.permute.xlu0 %436
  %v439 = vmul.f32 %v421, %v437
  %s440 = scalar_lea.vmem %s0, 32
  %v441 = vld [vmem:[%s440] sm:$0xff]
  %443 = vrot.lane.b32.xlu0 %v439, 64
  %v444 = vpop.permute.xlu0 %443
  %v445 = vsel %vm31, %v444, 0
  %447 = vmatprep.subr.mxu0 0.0
  %448 = vmatpush1.msra.mxu0 %v24
  %449 = vmatprep.subr.mxu0 0.0
  %450 = vmatpush1.msra.mxu0 %v25
  %451 = vmatprep.subr.mxu0 0.0
  %452 = vmatpush1.msra.mxu0 %v26
  %453 = vmatprep.subr.mxu0 0.0
  %454 = vmatpush1.msra.mxu0 %v27
  %455 = vmatprep.subr.mxu0 0.0
  %456 = vmatpush1.msra.mxu0 0.0
  %457 = vmatprep.subr.mxu0 0.0
  %458 = vmatpush1.msra.mxu0 0.0
  %459 = vmatprep.subr.mxu0 0.0
  %460 = vmatpush1.msra.mxu0 0.0
  %461 = vmatprep.subr.mxu0 0.0
  %462 = vmatpush1.msra.mxu0 0.0
  %463 = vmatprep.subr.mxu0 0.0
  %464 = vmatpush1.msra.mxu0 0.0
  %465 = vmatprep.subr.mxu0 0.0
  %466 = vmatpush1.msra.mxu0 0.0
  %467 = vmatprep.subr.mxu0 0.0
  %468 = vmatpush1.msra.mxu0 0.0
  %469 = vmatprep.subr.mxu0 0.0
  %470 = vmatpush1.msra.mxu0 0.0
  %471 = vmatprep.subr.mxu0 0.0
  %472 = vmatpush1.msra.mxu0 0.0
  %473 = vmatprep.subr.mxu0 0.0
  %474 = vmatpush1.msra.mxu0 0.0
  %475 = vmatprep.subr.mxu0 0.0
  %476 = vmatpush1.msra.mxu0 0.0
  %477 = vmatprep.subr.mxu0 0.0
  %478 = vmatpush1.msra.mxu0 0.0
  %479 = vmatprep.subr.mxu0 0.0
  %480 = vmatpush1.msra.mxu0 0.0
  %481 = vmatprep.subr.mxu0 0.0
  %482 = vmatpush1.msra.mxu0 0.0
  %483 = vmatprep.subr.mxu0 0.0
  %484 = vmatpush1.msra.mxu0 0.0
  %485 = vmatprep.subr.mxu0 0.0
  %486 = vmatpush1.msra.mxu0 0.0
  %487 = vmatprep.subr.mxu0 0.0
  %488 = vmatpush1.msra.mxu0 0.0
  %489 = vmatprep.subr.mxu0 0.0
  %490 = vmatpush1.msra.mxu0 0.0
  %491 = vmatprep.subr.mxu0 0.0
  %492 = vmatpush1.msra.mxu0 0.0
  %493 = vmatprep.subr.mxu0 0.0
  %494 = vmatpush1.msra.mxu0 0.0
  %495 = vmatprep.subr.mxu0 0.0
  %496 = vmatpush1.msra.mxu0 0.0
  %497 = vmatprep.subr.mxu0 0.0
  %498 = vmatpush1.msra.mxu0 0.0
  %499 = vmatprep.subr.mxu0 0.0
  %500 = vmatpush1.msra.mxu0 0.0
  %501 = vmatprep.subr.mxu0 0.0
  %502 = vmatpush1.msra.mxu0 0.0
  %503 = vmatprep.subr.mxu0 0.0
  %504 = vmatpush1.msra.mxu0 0.0
  %505 = vmatprep.subr.mxu0 0.0
  %506 = vmatpush1.msra.mxu0 0.0
  %507 = vmatprep.subr.mxu0 0.0
  %508 = vmatpush1.msra.mxu0 0.0
  %509 = vmatprep.subr.mxu0 0.0
  %510 = vmatpush1.msra.mxu0 0.0
  %511 = vmatprep.mubr.f32.mxu0 0.0
  %512 = vmatmul.mubr.f32.gmra.mrb[0].mxu0 %v445
  %v513 = vpop.f32.mrb[0].mxu0
  %v514 = vadd.f32 0.0, %v513
  %v515 = vpop.f32.mrb[0].mxu0
  %516 = vdwg.mxu0
  %v517 = vadd.f32 %v441, %v514
  %v518 = vxor.u32 %v517, 2147483648
  %v519 = vmul.f32 %v518, 1.442695
  %v520 = vpow.pop %v519
  %v521 = vadd.f32 %v520, 1.0
  %v522 = vrcp.pop %v521
  %v523 = vmul.f32 1.0, %v522
  %v524 = vtanh.pop %v517
  %v525 = vmul.f32 %v523, %v433
  %527 = vrot.lane.b32.xlu0 %v524, 32
  %v528 = vpop.permute.xlu0 %527
  %v530 = vmul.f32 %v523, %v528
  %532 = vrot.lane.b32.xlu0 %v530, 32
  %v533 = vpop.permute.xlu0 %532
  %v535 = vadd.f32 %v525, %v533
  %v536 = vtanh.pop %v535
  %538 = vrot.lane.b32.xlu0 %v536, 32
  %v539 = vpop.permute.xlu0 %538
  %v541 = vmul.f32 %v523, %v539
  %s542 = scalar_lea.vmem %s0, 40
  %v543 = vld [vmem:[%s542] sm:$0xff]
  %545 = vrot.lane.b32.xlu0 %v541, 64
  %v546 = vpop.permute.xlu0 %545
  %v547 = vsel %vm31, %v546, 0
  %549 = vmatprep.subr.mxu0 0.0
  %550 = vmatpush1.msra.mxu0 %v24
  %551 = vmatprep.subr.mxu0 0.0
  %552 = vmatpush1.msra.mxu0 %v25
  %553 = vmatprep.subr.mxu0 0.0
  %554 = vmatpush1.msra.mxu0 %v26
  %555 = vmatprep.subr.mxu0 0.0
  %556 = vmatpush1.msra.mxu0 %v27
  %557 = vmatprep.subr.mxu0 0.0
  %558 = vmatpush1.msra.mxu0 0.0
  %559 = vmatprep.subr.mxu0 0.0
  %560 = vmatpush1.msra.mxu0 0.0
  %561 = vmatprep.subr.mxu0 0.0
  %562 = vmatpush1.msra.mxu0 0.0
  %563 = vmatprep.subr.mxu0 0.0
  %564 = vmatpush1.msra.mxu0 0.0
  %565 = vmatprep.subr.mxu0 0.0
  %566 = vmatpush1.msra.mxu0 0.0
  %567 = vmatprep.subr.mxu0 0.0
  %568 = vmatpush1.msra.mxu0 0.0
  %569 = vmatprep.subr.mxu0 0.0
  %570 = vmatpush1.msra.mxu0 0.0
  %571 = vmatprep.subr.mxu0 0.0
  %572 = vmatpush1.msra.mxu0 0.0
  %573 = vmatprep.subr.mxu0 0.0
  %574 = vmatpush1.msra.mxu0 0.0
  %575 = vmatprep.subr.mxu0 0.0
  %576 = vmatpush1.msra.mxu0 0.0
  %577 = vmatprep.subr.mxu0 0.0
  %578 = vmatpush1.msra.mxu0 0.0
  %579 = vmatprep.subr.mxu0 0.0
  %580 = vmatpush1.msra.mxu0 0.0
  %581 = vmatprep.subr.mxu0 0.0
  %582 = vmatpush1.msra.mxu0 0.0
  %583 = vmatprep.subr.mxu0 0.0
  %584 = vmatpush1.msra.mxu0 0.0
  %585 = vmatprep.subr.mxu0 0.0
  %586 = vmatpush1.msra.mxu0 0.0
  %587 = vmatprep.subr.mxu0 0.0
  %588 = vmatpush1.msra.mxu0 0.0
  %589 = vmatprep.subr.mxu0 0.0
  %590 = vmatpush1.msra.mxu0 0.0
  %591 = vmatprep.subr.mxu0 0.0
  %592 = vmatpush1.msra.mxu0 0.0
  %593 = vmatprep.subr.mxu0 0.0
  %594 = vmatpush1.msra.mxu0 0.0
  %595 = vmatprep.subr.mxu0 0.0
  %596 = vmatpush1.msra.mxu0 0.0
  %597 = vmatprep.subr.mxu0 0.0
  %598 = vmatpush1.msra.mxu0 0.0
  %599 = vmatprep.subr.mxu0 0.0
  %600 = vmatpush1.msra.mxu0 0.0
  %601 = vmatprep.subr.mxu0 0.0
  %602 = vmatpush1.msra.mxu0 0.0
  %603 = vmatprep.subr.mxu0 0.0
  %604 = vmatpush1.msra.mxu0 0.0
  %605 = vmatprep.subr.mxu0 0.0
  %606 = vmatpush1.msra.mxu0 0.0
  %607 = vmatprep.subr.mxu0 0.0
  %608 = vmatpush1.msra.mxu0 0.0
  %609 = vmatprep.subr.mxu0 0.0
  %610 = vmatpush1.msra.mxu0 0.0
  %611 = vmatprep.subr.mxu0 0.0
  %612 = vmatpush1.msra.mxu0 0.0
  %613 = vmatprep.mubr.f32.mxu0 0.0
  %614 = vmatmul.mubr.f32.gmra.mrb[0].mxu0 %v547
  %v615 = vpop.f32.mrb[0].mxu0
  %v616 = vadd.f32 0.0, %v615
  %v617 = vpop.f32.mrb[0].mxu0
  %618 = vdwg.mxu0
  %v619 = vadd.f32 %v543, %v616
  %v620 = vxor.u32 %v619, 2147483648
  %v621 = vmul.f32 %v620, 1.442695
  %v622 = vpow.pop %v621
  %v623 = vadd.f32 %v622, 1.0
  %v624 = vrcp.pop %v623
  %v625 = vmul.f32 1.0, %v624
  %v626 = vtanh.pop %v619
  %v627 = vmul.f32 %v625, %v535
  %629 = vrot.lane.b32.xlu0 %v626, 32
  %v630 = vpop.permute.xlu0 %629
  %v632 = vmul.f32 %v625, %v630
  %634 = vrot.lane.b32.xlu0 %v632, 32
  %v635 = vpop.permute.xlu0 %634
  %v637 = vadd.f32 %v627, %v635
  %v638 = vtanh.pop %v637
  %640 = vrot.lane.b32.xlu0 %v638, 32
  %v641 = vpop.permute.xlu0 %640
  %v643 = vmul.f32 %v625, %v641
  %s644 = scalar_lea.vmem %s0, 48
  %v645 = vld [vmem:[%s644] sm:$0xff]
  %647 = vrot.lane.b32.xlu0 %v643, 64
  %v648 = vpop.permute.xlu0 %647
  %v649 = vsel %vm31, %v648, 0
  %651 = vmatprep.subr.mxu0 0.0
  %652 = vmatpush1.msra.mxu0 %v24
  %653 = vmatprep.subr.mxu0 0.0
  %654 = vmatpush1.msra.mxu0 %v25
  %655 = vmatprep.subr.mxu0 0.0
  %656 = vmatpush1.msra.mxu0 %v26
  %657 = vmatprep.subr.mxu0 0.0
  %658 = vmatpush1.msra.mxu0 %v27
  %659 = vmatprep.subr.mxu0 0.0
  %660 = vmatpush1.msra.mxu0 0.0
  %661 = vmatprep.subr.mxu0 0.0
  %662 = vmatpush1.msra.mxu0 0.0
  %663 = vmatprep.subr.mxu0 0.0
  %664 = vmatpush1.msra.mxu0 0.0
  %665 = vmatprep.subr.mxu0 0.0
  %666 = vmatpush1.msra.mxu0 0.0
  %667 = vmatprep.subr.mxu0 0.0
  %668 = vmatpush1.msra.mxu0 0.0
  %669 = vmatprep.subr.mxu0 0.0
  %670 = vmatpush1.msra.mxu0 0.0
  %671 = vmatprep.subr.mxu0 0.0
  %672 = vmatpush1.msra.mxu0 0.0
  %673 = vmatprep.subr.mxu0 0.0
  %674 = vmatpush1.msra.mxu0 0.0
  %675 = vmatprep.subr.mxu0 0.0
  %676 = vmatpush1.msra.mxu0 0.0
  %677 = vmatprep.subr.mxu0 0.0
  %678 = vmatpush1.msra.mxu0 0.0
  %679 = vmatprep.subr.mxu0 0.0
  %680 = vmatpush1.msra.mxu0 0.0
  %681 = vmatprep.subr.mxu0 0.0
  %682 = vmatpush1.msra.mxu0 0.0
  %683 = vmatprep.subr.mxu0 0.0
  %684 = vmatpush1.msra.mxu0 0.0
  %685 = vmatprep.subr.mxu0 0.0
  %686 = vmatpush1.msra.mxu0 0.0
  %687 = vmatprep.subr.mxu0 0.0
  %688 = vmatpush1.msra.mxu0 0.0
  %689 = vmatprep.subr.mxu0 0.0
  %690 = vmatpush1.msra.mxu0 0.0
  %691 = vmatprep.subr.mxu0 0.0
  %692 = vmatpush1.msra.mxu0 0.0
  %693 = vmatprep.subr.mxu0 0.0
  %694 = vmatpush1.msra.mxu0 0.0
  %695 = vmatprep.subr.mxu0 0.0
  %696 = vmatpush1.msra.mxu0 0.0
  %697 = vmatprep.subr.mxu0 0.0
  %698 = vmatpush1.msra.mxu0 0.0
  %699 = vmatprep.subr.mxu0 0.0
  %700 = vmatpush1.msra.mxu0 0.0
  %701 = vmatprep.subr.mxu0 0.0
  %702 = vmatpush1.msra.mxu0 0.0
  %703 = vmatprep.subr.mxu0 0.0
  %704 = vmatpush1.msra.mxu0 0.0
  %705 = vmatprep.subr.mxu0 0.0
  %706 = vmatpush1.msra.mxu0 0.0
  %707 = vmatprep.subr.mxu0 0.0
  %708 = vmatpush1.msra.mxu0 0.0
  %709 = vmatprep.subr.mxu0 0.0
  %710 = vmatpush1.msra.mxu0 0.0
  %711 = vmatprep.subr.mxu0 0.0
  %712 = vmatpush1.msra.mxu0 0.0
  %713 = vmatprep.subr.mxu0 0.0
  %714 = vmatpush1.msra.mxu0 0.0
  %715 = vmatprep.mubr.f32.mxu0 0.0
  %716 = vmatmul.mubr.f32.gmra.mrb[0].mxu0 %v649
  %v717 = vpop.f32.mrb[0].mxu0
  %v718 = vadd.f32 0.0, %v717
  %v719 = vpop.f32.mrb[0].mxu0
  %720 = vdwg.mxu0
  %v721 = vadd.f32 %v645, %v718
  %v722 = vxor.u32 %v721, 2147483648
  %v723 = vmul.f32 %v722, 1.442695
  %v724 = vpow.pop %v723
  %v725 = vadd.f32 %v724, 1.0
  %v726 = vrcp.pop %v725
  %v727 = vmul.f32 1.0, %v726
  %v728 = vtanh.pop %v721
  %v729 = vmul.f32 %v727, %v637
  %731 = vrot.lane.b32.xlu0 %v728, 32
  %v732 = vpop.permute.xlu0 %731
  %v734 = vmul.f32 %v727, %v732
  %736 = vrot.lane.b32.xlu0 %v734, 32
  %v737 = vpop.permute.xlu0 %736
  %v739 = vadd.f32 %v729, %v737
  %v740 = vtanh.pop %v739
  %742 = vrot.lane.b32.xlu0 %v740, 32
  %v743 = vpop.permute.xlu0 %742
  %v745 = vmul.f32 %v727, %v743
  %s746 = scalar_lea.vmem %s0, 56
  %v747 = vld [vmem:[%s746] sm:$0xff]
  %749 = vrot.lane.b32.xlu0 %v745, 64
  %v750 = vpop.permute.xlu0 %749
  %v751 = vsel %vm31, %v750, 0
  %753 = vmatprep.subr.mxu0 0.0
  %754 = vmatpush1.msra.mxu0 %v24
  %755 = vmatprep.subr.mxu0 0.0
  %756 = vmatpush1.msra.mxu0 %v25
  %757 = vmatprep.subr.mxu0 0.0
  %758 = vmatpush1.msra.mxu0 %v26
  %759 = vmatprep.subr.mxu0 0.0
  %760 = vmatpush1.msra.mxu0 %v27
  %761 = vmatprep.subr.mxu0 0.0
  %762 = vmatpush1.msra.mxu0 0.0
  %763 = vmatprep.subr.mxu0 0.0
  %764 = vmatpush1.msra.mxu0 0.0
  %765 = vmatprep.subr.mxu0 0.0
  %766 = vmatpush1.msra.mxu0 0.0
  %767 = vmatprep.subr.mxu0 0.0
  %768 = vmatpush1.msra.mxu0 0.0
  %769 = vmatprep.subr.mxu0 0.0
  %770 = vmatpush1.msra.mxu0 0.0
  %771 = vmatprep.subr.mxu0 0.0
  %772 = vmatpush1.msra.mxu0 0.0
  %773 = vmatprep.subr.mxu0 0.0
  %774 = vmatpush1.msra.mxu0 0.0
  %775 = vmatprep.subr.mxu0 0.0
  %776 = vmatpush1.msra.mxu0 0.0
  %777 = vmatprep.subr.mxu0 0.0
  %778 = vmatpush1.msra.mxu0 0.0
  %779 = vmatprep.subr.mxu0 0.0
  %780 = vmatpush1.msra.mxu0 0.0
  %781 = vmatprep.subr.mxu0 0.0
  %782 = vmatpush1.msra.mxu0 0.0
  %783 = vmatprep.subr.mxu0 0.0
  %784 = vmatpush1.msra.mxu0 0.0
  %785 = vmatprep.subr.mxu0 0.0
  %786 = vmatpush1.msra.mxu0 0.0
  %787 = vmatprep.subr.mxu0 0.0
  %788 = vmatpush1.msra.mxu0 0.0
  %789 = vmatprep.subr.mxu0 0.0
  %790 = vmatpush1.msra.mxu0 0.0
  %791 = vmatprep.subr.mxu0 0.0
  %792 = vmatpush1.msra.mxu0 0.0
  %793 = vmatprep.subr.mxu0 0.0
  %794 = vmatpush1.msra.mxu0 0.0
  %795 = vmatprep.subr.mxu0 0.0
  %796 = vmatpush1.msra.mxu0 0.0
  %797 = vmatprep.subr.mxu0 0.0
  %798 = vmatpush1.msra.mxu0 0.0
  %799 = vmatprep.subr.mxu0 0.0
  %800 = vmatpush1.msra.mxu0 0.0
  %801 = vmatprep.subr.mxu0 0.0
  %802 = vmatpush1.msra.mxu0 0.0
  %803 = vmatprep.subr.mxu0 0.0
  %804 = vmatpush1.msra.mxu0 0.0
  %805 = vmatprep.subr.mxu0 0.0
  %806 = vmatpush1.msra.mxu0 0.0
  %807 = vmatprep.subr.mxu0 0.0
  %808 = vmatpush1.msra.mxu0 0.0
  %809 = vmatprep.subr.mxu0 0.0
  %810 = vmatpush1.msra.mxu0 0.0
  %811 = vmatprep.subr.mxu0 0.0
  %812 = vmatpush1.msra.mxu0 0.0
  %813 = vmatprep.subr.mxu0 0.0
  %814 = vmatpush1.msra.mxu0 0.0
  %815 = vmatprep.subr.mxu0 0.0
  %816 = vmatpush1.msra.mxu0 0.0
  %817 = vmatprep.mubr.f32.mxu0 0.0
  %818 = vmatmul.mubr.f32.gmra.mrb[0].mxu0 %v751
  %v819 = vpop.f32.mrb[0].mxu0
  %v820 = vadd.f32 0.0, %v819
  %v821 = vpop.f32.mrb[0].mxu0
  %822 = vdwg.mxu0
  %v823 = vadd.f32 %v747, %v820
  %v824 = vxor.u32 %v823, 2147483648
  %v825 = vmul.f32 %v824, 1.442695
  %v826 = vpow.pop %v825
  %v827 = vadd.f32 %v826, 1.0
  %v828 = vrcp.pop %v827
  %v829 = vmul.f32 1.0, %v828
  %v830 = vtanh.pop %v823
  %v831 = vmul.f32 %v829, %v739
  %833 = vrot.lane.b32.xlu0 %v830, 32
  %v834 = vpop.permute.xlu0 %833
  %v836 = vmul.f32 %v829, %v834
  %838 = vrot.lane.b32.xlu0 %v836, 32
  %v839 = vpop.permute.xlu0 %838
  %v841 = vadd.f32 %v831, %v839
  %v842 = vtanh.pop %v841
  %844 = vrot.lane.b32.xlu0 %v842, 32
  %v845 = vpop.permute.xlu0 %844
  %v847 = vmul.f32 %v829, %v845
  %849 = vrot.lane.b32.xlu0 %v847, 64
  %v850 = vpop.permute.xlu0 %849
  %852 = vst.msk [vmem:[#allocation2] sm:$0xff] %vm31, %v850
  %854 = vrot.lane.b32.xlu0 %v841, 96
  %v855 = vpop.permute.xlu0 %854
  %857 = vst.msk [vmem:[#allocation3] sm:$0xff] %vm31, %v855
  // Predicated region
  $region22: #{lstm_forecast_forward.1} parent=0 // pred_check
    %p858 = pneg %p17
  $region23: #{lstm_forecast_forward.1} parent=0 // pred_check_branch
    %860 = sbr.rel (%p858) target = $region25
  $region24: #{lstm_forecast_forward.1} parent=0 // pred_region
    %v861 = vld [vmem:[%s2] sm:$0xff]
    %v862 = vld [vmem:[%s2 + $0x8] sm:$0xff]
    %v863 = vld [vmem:[%s2 + $0x10] sm:$0xff]
    %v864 = vld [vmem:[%s2 + $0x18] sm:$0xff]
    %v865 = vld [vmem:[%s3] sm:$0x1]
    %v867 = vlaneseq
    %v868 = vshrl.u32 %v867, 7
    %v869 = vsub.s32 0, %v868
    %v870 = vrot.slane %v865, %v869
    %v872 = vsel %vm31, %v850, 0
    %874 = vmatprep.subr.mxu0 0.0
    %875 = vmatpush1.msra.mxu0 %v861
    %876 = vmatprep.subr.mxu0 0.0
    %877 = vmatpush1.msra.mxu0 %v862
    %878 = vmatprep.subr.mxu0 0.0
    %879 = vmatpush1.msra.mxu0 %v863
    %880 = vmatprep.subr.mxu0 0.0
    %881 = vmatpush1.msra.mxu0 %v864
    %882 = vmatprep.subr.mxu0 0.0
    %883 = vmatpush1.msra.mxu0 0.0
    %884 = vmatprep.subr.mxu0 0.0
    %885 = vmatpush1.msra.mxu0 0.0
    %886 = vmatprep.subr.mxu0 0.0
    %887 = vmatpush1.msra.mxu0 0.0
    %888 = vmatprep.subr.mxu0 0.0
    %889 = vmatpush1.msra.mxu0 0.0
    %890 = vmatprep.subr.mxu0 0.0
    %891 = vmatpush1.msra.mxu0 0.0
    %892 = vmatprep.subr.mxu0 0.0
    %893 = vmatpush1.msra.mxu0 0.0
    %894 = vmatprep.subr.mxu0 0.0
    %895 = vmatpush1.msra.mxu0 0.0
    %896 = vmatprep.subr.mxu0 0.0
    %897 = vmatpush1.msra.mxu0 0.0
    %898 = vmatprep.subr.mxu0 0.0
    %899 = vmatpush1.msra.mxu0 0.0
    %900 = vmatprep.subr.mxu0 0.0
    %901 = vmatpush1.msra.mxu0 0.0
    %902 = vmatprep.subr.mxu0 0.0
    %903 = vmatpush1.msra.mxu0 0.0
    %904 = vmatprep.subr.mxu0 0.0
    %905 = vmatpush1.msra.mxu0 0.0
    %906 = vmatprep.subr.mxu0 0.0
    %907 = vmatpush1.msra.mxu0 0.0
    %908 = vmatprep.subr.mxu0 0.0
    %909 = vmatpush1.msra.mxu0 0.0
    %910 = vmatprep.subr.mxu0 0.0
    %911 = vmatpush1.msra.mxu0 0.0
    %912 = vmatprep.subr.mxu0 0.0
    %913 = vmatpush1.msra.mxu0 0.0
    %914 = vmatprep.subr.mxu0 0.0
    %915 = vmatpush1.msra.mxu0 0.0
    %916 = vmatprep.subr.mxu0 0.0
    %917 = vmatpush1.msra.mxu0 0.0
    %918 = vmatprep.subr.mxu0 0.0
    %919 = vmatpush1.msra.mxu0 0.0
    %920 = vmatprep.subr.mxu0 0.0
    %921 = vmatpush1.msra.mxu0 0.0
    %922 = vmatprep.subr.mxu0 0.0
    %923 = vmatpush1.msra.mxu0 0.0
    %924 = vmatprep.subr.mxu0 0.0
    %925 = vmatpush1.msra.mxu0 0.0
    %926 = vmatprep.subr.mxu0 0.0
    %927 = vmatpush1.msra.mxu0 0.0
    %928 = vmatprep.subr.mxu0 0.0
    %929 = vmatpush1.msra.mxu0 0.0
    %930 = vmatprep.subr.mxu0 0.0
    %931 = vmatpush1.msra.mxu0 0.0
    %932 = vmatprep.subr.mxu0 0.0
    %933 = vmatpush1.msra.mxu0 0.0
    %934 = vmatprep.subr.mxu0 0.0
    %935 = vmatpush1.msra.mxu0 0.0
    %936 = vmatprep.subr.mxu0 0.0
    %937 = vmatpush1.msra.mxu0 0.0
    %938 = vmatprep.mubr.f32.mxu0 0.0
    %939 = vmatmul.mubr.f32.gmra.mrb[0].mxu0 %v872
    %v940 = vpop.f32.mrb[0].mxu0
    %v941 = vadd.f32 %v870, %v940
    %v942 = vpop.f32.mrb[0].mxu0
    %943 = vdwg.mxu0
    %vm944 = vcmask 162816
    %945 = vst.msk [vmem:[%s4] sm:$0xff] %vm944, %v941
  $region25: #{lstm_forecast_forward.1} parent=0 // pred_fallthru
    _
  // Predicated region
  $region26: #{lstm_forecast_forward.1} parent=0 // pred_check
    _
  $region27: #{lstm_forecast_forward.1} parent=0 // pred_check_branch
    %947 = sbr.rel (0) target = $region29
  $region28: #{lstm_forecast_forward.1} parent=0 // pred_region
    _
  $region29: #{lstm_forecast_forward.1} parent=0 // pred_fallthru
    _
  // Predicated region
  $region30: #{lstm_forecast_forward.1} parent=0 // pred_check
    _
  $region31: #{lstm_forecast_forward.1} parent=0 // pred_check_branch
    %949 = sbr.rel (0) target = $region33
  $region32: #{lstm_forecast_forward.1} parent=0 // pred_region
    _
  $region33: #{lstm_forecast_forward.1} parent=0 // pred_fallthru
    _

</llo_original>
